<compile_context>
chip_gen: v5e
topology: v5e:2x2
jax: 0.10.0
libtpu: 0.0.40
codegen_flags: <defaults>
</compile_context>

<pallas_src>
import functools

import jax
import jax.numpy as jnp
from jax.experimental import pallas as pl
from jax.experimental.pallas import tpu as pltpu


def cross_attn_kernel(x_ref, y_ref, wq_ref, bq_ref, wkv_ref, bkv_ref, o_ref,
                      k_s, v_s, q_s, m_s, l_s, acc_s,
                      *, num_heads, scale, tk):
    """One grid step = (batch b, query tile qt, kv tile kt); heads batched."""
    qt = pl.program_id(1)
    kt = pl.program_id(2)
    n_kt = pl.num_programs(2)

    C = o_ref.shape[-1]
    H = num_heads
    hd = C // H
    TQ = q_s.shape[0]
    cdt = k_s.dtype            # MXU operand dtype follows the inputs (bf16-ready)

    # ---- once per batch: K/V projection cached in persistent VMEM scratch ---
    @pl.when(jnp.logical_and(qt == 0, kt == 0))
    def _():
        x = x_ref[0]                                               # (N, C)
        kv = jnp.dot(x, wkv_ref[...],
                     preferred_element_type=jnp.float32) + bkv_ref[...]
        kv = kv.astype(cdt)
        k_s[...] = kv[:, :C]                                       # (N, C)
        v_s[...] = kv[:, C:]                                       # (N, C)

    # ---- once per query tile: Q projection (scale folded) + softmax state ---
    @pl.when(kt == 0)
    def _():
        y = y_ref[0]                                               # (TQ, C)
        q = jnp.dot(y, wq_ref[...],
                    preferred_element_type=jnp.float32) + bq_ref[...]
        q_s[...] = (q * scale).astype(cdt)
        m_s[...] = jnp.full(m_s.shape, -jnp.inf, dtype=m_s.dtype)
        l_s[...] = jnp.zeros(l_s.shape, dtype=l_s.dtype)
        acc_s[...] = jnp.zeros(acc_s.shape, dtype=acc_s.dtype)

    # ---- online-softmax attention on this (query tile, KV tile) pair --------
    off = pl.multiple_of(kt * tk, tk)
    qh = q_s[...].reshape(TQ, H, hd)                               # (TQ, H, hd)
    kh = k_s[pl.ds(off, tk), :].reshape(tk, H, hd)                 # (TK, H, hd)
    vh = v_s[pl.ds(off, tk), :].reshape(tk, H, hd)                 # (TK, H, hd)

    # scores: one batched dot_general over heads (contracts hd)
    s = jnp.einsum('qhd,khd->hqk', qh, kh,
                   preferred_element_type=jnp.float32)             # (H, TQ, TK) f32

    # numerically-stable online softmax (normalization deferred to finalize)
    m_new = jnp.maximum(m_s[...], s.max(axis=-1, keepdims=True))   # (H, TQ, 1)
    alpha = jnp.exp(m_s[...] - m_new)
    p = jnp.exp(s - m_new)                                         # unnormalized probs
    l_s[...] = alpha * l_s[...] + p.sum(axis=-1, keepdims=True)
    acc_s[...] = alpha * acc_s[...] + jnp.einsum(
        'hqk,khd->hqd', p.astype(cdt), vh,
        preferred_element_type=jnp.float32)                        # (H, TQ, hd)
    m_s[...] = m_new

    # ---- finalize: normalize once, single lane-dense (TQ, C) output store ---
    @pl.when(kt == n_kt - 1)
    def _():
        out = acc_s[...] * pl.reciprocal(l_s[...])                 # exact reciprocal (EUP)
        o_ref[0] = out.transpose(1, 0, 2).reshape(TQ, C).astype(o_ref.dtype)


def _pick_tile(n, candidates):
    for t in candidates:
        if n % t == 0:
            return t
    return n


def cross_attention_forward(x, y, wq, bq, wkv, bkv, num_heads):
    B, N, C = x.shape
    hd = C // num_heads
    scale = hd ** (-0.5)

    # Tile sizes: (8,128)-aligned divisors of N, else the full sequence.
    # Larger tiles amortize the ~0.35us per-grid-step overhead (v5e/v6e).
    TQ = _pick_tile(N, (256, 128))
    TK = _pick_tile(N, (512, 256, 128))
    n_qt = N // TQ
    n_kt = N // TK

    # Per-generation VMEM budget: ~0.85 * physical (v5e/v6e ~108 MiB,
    # v7x ~54 MiB), so a v6e-comfortable tiling does not silently OOM on v7x.
    try:
        vmem_cap = getattr(pltpu.get_tpu_info(), "vmem_capacity_bytes",
                           64 * 1024 * 1024)
    except Exception:
        vmem_cap = 64 * 1024 * 1024
    vmem_limit = min(int(vmem_cap * 0.85), 112 * 1024 * 1024)

    cdt = x.dtype
    kernel = functools.partial(cross_attn_kernel, num_heads=num_heads,
                               scale=scale, tk=TK)

    return pl.pallas_call(
        kernel,
        out_shape=jax.ShapeDtypeStruct((B, N, C), x.dtype),
        grid=(B, n_qt, n_kt),
        in_specs=[
            pl.BlockSpec((1, N, C), lambda b, qt, kt: (b, 0, 0)),    # x (KV src, 1 DMA / batch)
            pl.BlockSpec((1, TQ, C), lambda b, qt, kt: (b, qt, 0)),  # y (query tile, resident over kt)
            pl.BlockSpec((C, C), lambda b, qt, kt: (0, 0)),          # Wq  (VMEM-resident)
            pl.BlockSpec((1, C), lambda b, qt, kt: (0, 0)),          # bq
            pl.BlockSpec((C, 2 * C), lambda b, qt, kt: (0, 0)),      # Wkv (VMEM-resident)
            pl.BlockSpec((1, 2 * C), lambda b, qt, kt: (0, 0)),      # bkv
        ],
        out_specs=pl.BlockSpec((1, TQ, C), lambda b, qt, kt: (b, qt, 0)),
        scratch_shapes=[
            pltpu.VMEM((N, C), cdt),                        # k cache   (per batch)
            pltpu.VMEM((N, C), cdt),                        # v cache   (per batch)
            pltpu.VMEM((TQ, C), cdt),                       # scaled q  (per query tile)
            pltpu.VMEM((num_heads, TQ, 1), jnp.float32),    # running max  m
            pltpu.VMEM((num_heads, TQ, 1), jnp.float32),    # running sum  l
            pltpu.VMEM((num_heads, TQ, hd), jnp.float32),   # output accumulator
        ],
        compiler_params=pltpu.CompilerParams(
            dimension_semantics=("parallel", "arbitrary", "arbitrary"),
            vmem_limit_bytes=vmem_limit),
    )(x, y, wq, bq.reshape(1, C), wkv, bkv.reshape(1, 2 * C))


def cross_attention_ref(x, y, wq, bq, wkv, bkv, num_heads):
    """Pure-JAX reference mirroring the PyTorch forward."""
    B, N, C = x.shape
    hd = C // num_heads
    scale = hd ** (-0.5)
    q = (y @ wq + bq).reshape(B, N, num_heads, hd).transpose(0, 2, 1, 3)   # (B,H,N,hd)
    kv = x @ wkv + bkv
    k = kv[..., :C].reshape(B, N, num_heads, hd).transpose(0, 2, 1, 3)
    v = kv[..., C:].reshape(B, N, num_heads, hd).transpose(0, 2, 1, 3)
    attn = jax.nn.softmax((q * scale) @ jnp.swapaxes(k, -1, -2), axis=-1)
    return (attn @ v).transpose(0, 2, 1, 3).reshape(B, N, C)


if __name__ == "__main__":
    B, N, C, H = 2, 8, 32, 4   # batch, seq, dim, num_heads  (head_dim = 8)

    key = jax.random.PRNGKey(0)
    k1, k2, k3, k4, k5, k6 = jax.random.split(key, 6)
    x = jax.random.normal(k1, (B, N, C), dtype=jnp.float32)
    y = jax.random.normal(k2, (B, N, C), dtype=jnp.float32)

    # Synthetic parameters: nn.Linear(dim, dim) and nn.Linear(dim, 2*dim),
    # stored transposed as (in, out).
    wq = 0.05 * jax.random.normal(k3, (C, C), dtype=jnp.float32)
    bq = 0.05 * jax.random.normal(k4, (C,), dtype=jnp.float32)
    wkv = 0.05 * jax.random.normal(k5, (C, 2 * C), dtype=jnp.float32)
    bkv = 0.05 * jax.random.normal(k6, (2 * C,), dtype=jnp.float32)

    out = cross_attention_forward(x, y, wq, bq, wkv, bkv, H)
    out = jax.block_until_ready(out)

    ref = cross_attention_ref(x, y, wq, bq, wkv, bkv, H)
    assert out.shape == (B, N, C)
    # Exact-reciprocal softmax; remaining tolerance covers default MXU
    # precision (bf16 passes) and the different reduction/tile ordering.
    assert jnp.allclose(out, ref, atol=1e-3, rtol=1e-3), "mismatch vs JAX reference"

    print("KERNEL_OK")
</pallas_src>

<mosaic_0001>
module attributes {stable_mosaic.version = 11 : i64} {
  func.func @cross_attn_kernel(%arg0: i32, %arg1: i32, %arg2: i32, %arg3: memref<1x8x32xf32, #tpu.memory_space<vmem>>, %arg4: memref<1x8x32xf32, #tpu.memory_space<vmem>>, %arg5: memref<32x32xf32, #tpu.memory_space<vmem>>, %arg6: memref<1x32xf32, #tpu.memory_space<vmem>>, %arg7: memref<32x64xf32, #tpu.memory_space<vmem>>, %arg8: memref<1x64xf32, #tpu.memory_space<vmem>>, %arg9: memref<1x8x32xf32, #tpu.memory_space<vmem>>, %arg10: memref<8x32xf32, #tpu.memory_space<vmem>>, %arg11: memref<8x32xf32, #tpu.memory_space<vmem>>, %arg12: memref<8x32xf32, #tpu.memory_space<vmem>>, %arg13: memref<4x8x1xf32, #tpu.memory_space<vmem>>, %arg14: memref<4x8x1xf32, #tpu.memory_space<vmem>>, %arg15: memref<4x8x8xf32, #tpu.memory_space<vmem>>) attributes {dimension_semantics = [#tpu.dimension_semantics<parallel>, #tpu.dimension_semantics<arbitrary>, #tpu.dimension_semantics<arbitrary>], iteration_bounds = array<i64: 2, 1, 1>, scalar_prefetch = 0 : i64, scratch_operands = 6 : i64, tpu.core_type = #tpu.core_type<tc>, window_params = [{transform_indices = @transform_0, window_bounds = array<i64: 1, 8, 32>}, {transform_indices = @transform_1, window_bounds = array<i64: 1, 8, 32>}, {pipeline_mode = #tpu.pipeline_mode<synchronous>, transform_indices = @transform_2, window_bounds = array<i64: 32, 32>}, {pipeline_mode = #tpu.pipeline_mode<synchronous>, transform_indices = @transform_3, window_bounds = array<i64: 1, 32>}, {pipeline_mode = #tpu.pipeline_mode<synchronous>, transform_indices = @transform_4, window_bounds = array<i64: 32, 64>}, {pipeline_mode = #tpu.pipeline_mode<synchronous>, transform_indices = @transform_5, window_bounds = array<i64: 1, 64>}, {transform_indices = @transform_6, window_bounds = array<i64: 1, 8, 32>}]} {
    %c0_i32 = arith.constant 0 : i32
    %0 = arith.cmpi eq, %arg1, %c0_i32 : i32
    %c0_i32_0 = arith.constant 0 : i32
    %1 = arith.cmpi eq, %arg2, %c0_i32_0 : i32
    %2 = arith.andi %0, %1 : i1
    %3 = arith.extui %2 : i1 to i32
    %c0_i32_1 = arith.constant 0 : i32
    %4 = arith.cmpi ne, %3, %c0_i32_1 : i32
    scf.if %4 {
      %c0_33 = arith.constant 0 : index
      %c0_34 = arith.constant 0 : index
      %c0_35 = arith.constant 0 : index
      %45 = vector.load %arg3[%c0_33, %c0_34, %c0_35] : memref<1x8x32xf32, #tpu.memory_space<vmem>>, vector<1x8x32xf32>
      %46 = vector.shape_cast %45 : vector<1x8x32xf32> to vector<8x32xf32>
      %c0_36 = arith.constant 0 : index
      %c0_37 = arith.constant 0 : index
      %47 = vector.load %arg7[%c0_36, %c0_37] : memref<32x64xf32, #tpu.memory_space<vmem>>, vector<32x64xf32>
      %cst_38 = arith.constant dense<0.000000e+00> : vector<8x64xf32>
      %48 = tpu.matmul %46, %47, %cst_38 {dimension_numbers = #tpu.dot_dimension_numbers<[1], [0], [0], [1], [0, 0, 1, 1], [], []>} : vector<8x32xf32>, vector<32x64xf32>, vector<8x64xf32> -> vector<8x64xf32>
      %c0_39 = arith.constant 0 : index
      %c0_40 = arith.constant 0 : index
      %49 = vector.load %arg8[%c0_39, %c0_40] : memref<1x64xf32, #tpu.memory_space<vmem>>, vector<1x64xf32>
      %50 = vector.broadcast %49 : vector<1x64xf32> to vector<8x64xf32>
      %51 = arith.addf %48, %50 : vector<8x64xf32>
      %52 = vector.extract_strided_slice %51 {offsets = [0, 0], sizes = [8, 32], strides = [1, 1]} : vector<8x64xf32> to vector<8x32xf32>
      %c0_41 = arith.constant 0 : index
      %c0_42 = arith.constant 0 : index
      %53 = vector.load %arg10[%c0_41, %c0_42] : memref<8x32xf32, #tpu.memory_space<vmem>>, vector<8x32xf32>
      tpu.vector_store %arg10[%c0_41, %c0_42], %52 {strides = array<i32>} : memref<8x32xf32, #tpu.memory_space<vmem>>, vector<8x32xf32>,
      %54 = vector.extract_strided_slice %51 {offsets = [0, 32], sizes = [8, 32], strides = [1, 1]} : vector<8x64xf32> to vector<8x32xf32>
      %c0_43 = arith.constant 0 : index
      %c0_44 = arith.constant 0 : index
      %55 = vector.load %arg11[%c0_43, %c0_44] : memref<8x32xf32, #tpu.memory_space<vmem>>, vector<8x32xf32>
      tpu.vector_store %arg11[%c0_43, %c0_44], %54 {strides = array<i32>} : memref<8x32xf32, #tpu.memory_space<vmem>>, vector<8x32xf32>,
    } else {
    }
    %c0_i32_2 = arith.constant 0 : i32
    %5 = arith.cmpi eq, %arg2, %c0_i32_2 : i32
    %6 = arith.extui %5 : i1 to i32
    %c0_i32_3 = arith.constant 0 : i32
    %7 = arith.cmpi ne, %6, %c0_i32_3 : i32
    scf.if %7 {
      %c0_33 = arith.constant 0 : index
      %c0_34 = arith.constant 0 : index
      %c0_35 = arith.constant 0 : index
      %45 = vector.load %arg4[%c0_33, %c0_34, %c0_35] : memref<1x8x32xf32, #tpu.memory_space<vmem>>, vector<1x8x32xf32>
      %46 = vector.shape_cast %45 : vector<1x8x32xf32> to vector<8x32xf32>
      %c0_36 = arith.constant 0 : index
      %c0_37 = arith.constant 0 : index
      %47 = vector.load %arg5[%c0_36, %c0_37] : memref<32x32xf32, #tpu.memory_space<vmem>>, vector<32x32xf32>
      %cst_38 = arith.constant dense<0.000000e+00> : vector<8x32xf32>
      %48 = tpu.matmul %46, %47, %cst_38 {dimension_numbers = #tpu.dot_dimension_numbers<[1], [0], [0], [1], [0, 0, 1, 1], [], []>} : vector<8x32xf32>, vector<32x32xf32>, vector<8x32xf32> -> vector<8x32xf32>
      %c0_39 = arith.constant 0 : index
      %c0_40 = arith.constant 0 : index
      %49 = vector.load %arg6[%c0_39, %c0_40] : memref<1x32xf32, #tpu.memory_space<vmem>>, vector<1x32xf32>
      %50 = vector.broadcast %49 : vector<1x32xf32> to vector<8x32xf32>
      %51 = arith.addf %48, %50 : vector<8x32xf32>
      %cst_41 = arith.constant 0.353553385 : f32
      %52 = vector.broadcast %cst_41 : f32 to vector<8x32xf32>
      %53 = arith.mulf %51, %52 : vector<8x32xf32>
      %c0_42 = arith.constant 0 : index
      %c0_43 = arith.constant 0 : index
      %54 = vector.load %arg12[%c0_42, %c0_43] : memref<8x32xf32, #tpu.memory_space<vmem>>, vector<8x32xf32>
      tpu.vector_store %arg12[%c0_42, %c0_43], %53 {strides = array<i32>} : memref<8x32xf32, #tpu.memory_space<vmem>>, vector<8x32xf32>,
      %cst_44 = arith.constant 0xFF800000 : f32
      %55 = vector.broadcast %cst_44 : f32 to vector<4x8x1xf32>
      %c0_45 = arith.constant 0 : index
      %c0_46 = arith.constant 0 : index
      %c0_47 = arith.constant 0 : index
      %56 = vector.load %arg13[%c0_45, %c0_46, %c0_47] : memref<4x8x1xf32, #tpu.memory_space<vmem>>, vector<4x8x1xf32>
      tpu.vector_store %arg13[%c0_45, %c0_46, %c0_47], %55 {strides = array<i32>} : memref<4x8x1xf32, #tpu.memory_space<vmem>>, vector<4x8x1xf32>,
      %cst_48 = arith.constant 0.000000e+00 : f32
      %57 = vector.broadcast %cst_48 : f32 to vector<4x8x1xf32>
      %c0_49 = arith.constant 0 : index
      %c0_50 = arith.constant 0 : index
      %c0_51 = arith.constant 0 : index
      %58 = vector.load %arg14[%c0_49, %c0_50, %c0_51] : memref<4x8x1xf32, #tpu.memory_space<vmem>>, vector<4x8x1xf32>
      tpu.vector_store %arg14[%c0_49, %c0_50, %c0_51], %57 {strides = array<i32>} : memref<4x8x1xf32, #tpu.memory_space<vmem>>, vector<4x8x1xf32>,
      %cst_52 = arith.constant 0.000000e+00 : f32
      %59 = vector.broadcast %cst_52 : f32 to vector<4x8x8xf32>
      %c0_53 = arith.constant 0 : index
      %c0_54 = arith.constant 0 : index
      %c0_55 = arith.constant 0 : index
      %60 = vector.load %arg15[%c0_53, %c0_54, %c0_55] : memref<4x8x8xf32, #tpu.memory_space<vmem>>, vector<4x8x8xf32>
      tpu.vector_store %arg15[%c0_53, %c0_54, %c0_55], %59 {strides = array<i32>} : memref<4x8x8xf32, #tpu.memory_space<vmem>>, vector<4x8x8xf32>,
    } else {
    }
    %c8_i32 = arith.constant 8 : i32
    %8 = arith.muli %arg2, %c8_i32 : i32
    %9 = tpu.assume_multiple %8, 8 : i32
    %c0 = arith.constant 0 : index
    %c0_4 = arith.constant 0 : index
    %10 = vector.load %arg12[%c0, %c0_4] : memref<8x32xf32, #tpu.memory_space<vmem>>, vector<8x32xf32>
    %11 = vector.shape_cast %10 : vector<8x32xf32> to vector<8x4x8xf32>
    %12 = arith.index_cast %9 : i32 to index
    %c0_5 = arith.constant 0 : index
    %13 = vector.load %arg10[%12, %c0_5] : memref<8x32xf32, #tpu.memory_space<vmem>>, vector<8x32xf32>
    %14 = vector.shape_cast %13 : vector<8x32xf32> to vector<8x4x8xf32>
    %15 = arith.index_cast %9 : i32 to index
    %c0_6 = arith.constant 0 : index
    %16 = vector.load %arg11[%15, %c0_6] : memref<8x32xf32, #tpu.memory_space<vmem>>, vector<8x32xf32>
    %17 = vector.shape_cast %16 : vector<8x32xf32> to vector<8x4x8xf32>
    "tpu.trace_start"() <{level = 10 : i32, message = "qhd,khd->hqk"}> : () -> ()
    %cst = arith.constant dense<0.000000e+00> : vector<4x8x8xf32>
    %18 = tpu.matmul %11, %14, %cst {dimension_numbers = #tpu.dot_dimension_numbers<[2], [2], [0], [0], [0, 1, 0, 0, 1, 0], [1], [1]>} : vector<8x4x8xf32>, vector<8x4x8xf32>, vector<4x8x8xf32> -> vector<4x8x8xf32>
    "tpu.trace_stop"() : () -> ()
    %c0_7 = arith.constant 0 : index
    %c0_8 = arith.constant 0 : index
    %c0_9 = arith.constant 0 : index
    %19 = vector.load %arg13[%c0_7, %c0_8, %c0_9] : memref<4x8x1xf32, #tpu.memory_space<vmem>>, vector<4x8x1xf32>
    %cst_10 = arith.constant dense<0xFF800000> : vector<4x8xf32>
    %20 = vector.multi_reduction <maximumf>, %18, %cst_10 [2] : vector<4x8x8xf32> to vector<4x8xf32>
    %21 = vector.shape_cast %20 : vector<4x8xf32> to vector<4x8x1xf32>
    %22 = arith.maximumf %19, %21 : vector<4x8x1xf32>
    %c0_11 = arith.constant 0 : index
    %c0_12 = arith.constant 0 : index
    %c0_13 = arith.constant 0 : index
    %23 = vector.load %arg13[%c0_11, %c0_12, %c0_13] : memref<4x8x1xf32, #tpu.memory_space<vmem>>, vector<4x8x1xf32>
    %24 = arith.subf %23, %22 : vector<4x8x1xf32>
    %25 = math.exp %24 : vector<4x8x1xf32>
    %26 = vector.broadcast %22 : vector<4x8x1xf32> to vector<4x8x8xf32>
    %27 = arith.subf %18, %26 : vector<4x8x8xf32>
    %28 = math.exp %27 : vector<4x8x8xf32>
    %c0_14 = arith.constant 0 : index
    %c0_15 = arith.constant 0 : index
    %c0_16 = arith.constant 0 : index
    %29 = vector.load %arg14[%c0_14, %c0_15, %c0_16] : memref<4x8x1xf32, #tpu.memory_space<vmem>>, vector<4x8x1xf32>
    %30 = arith.mulf %25, %29 : vector<4x8x1xf32>
    %cst_17 = arith.constant dense<0.000000e+00> : vector<4x8xf32>
    %31 = vector.multi_reduction <add>, %28, %cst_17 [2] : vector<4x8x8xf32> to vector<4x8xf32>
    %32 = vector.shape_cast %31 : vector<4x8xf32> to vector<4x8x1xf32>
    %33 = arith.addf %30, %32 : vector<4x8x1xf32>
    %c0_18 = arith.constant 0 : index
    %c0_19 = arith.constant 0 : index
    %c0_20 = arith.constant 0 : index
    %34 = vector.load %arg14[%c0_18, %c0_19, %c0_20] : memref<4x8x1xf32, #tpu.memory_space<vmem>>, vector<4x8x1xf32>
    tpu.vector_store %arg14[%c0_18, %c0_19, %c0_20], %33 {strides = array<i32>} : memref<4x8x1xf32, #tpu.memory_space<vmem>>, vector<4x8x1xf32>,
    %c0_21 = arith.constant 0 : index
    %c0_22 = arith.constant 0 : index
    %c0_23 = arith.constant 0 : index
    %35 = vector.load %arg15[%c0_21, %c0_22, %c0_23] : memref<4x8x8xf32, #tpu.memory_space<vmem>>, vector<4x8x8xf32>
    %36 = vector.broadcast %25 : vector<4x8x1xf32> to vector<4x8x8xf32>
    %37 = arith.mulf %36, %35 : vector<4x8x8xf32>
    "tpu.trace_start"() <{level = 10 : i32, message = "hqk,khd->hqd"}> : () -> ()
    %cst_24 = arith.constant dense<0.000000e+00> : vector<4x8x8xf32>
    %38 = tpu.matmul %28, %17, %cst_24 {dimension_numbers = #tpu.dot_dimension_numbers<[2], [0], [1], [2], [0, 0, 0, 1, 1, 2], [0], [1]>} : vector<4x8x8xf32>, vector<8x4x8xf32>, vector<4x8x8xf32> -> vector<4x8x8xf32>
    "tpu.trace_stop"() : () -> ()
    %39 = arith.addf %37, %38 : vector<4x8x8xf32>
    %c0_25 = arith.constant 0 : index
    %c0_26 = arith.constant 0 : index
    %c0_27 = arith.constant 0 : index
    %40 = vector.load %arg15[%c0_25, %c0_26, %c0_27] : memref<4x8x8xf32, #tpu.memory_space<vmem>>, vector<4x8x8xf32>
    tpu.vector_store %arg15[%c0_25, %c0_26, %c0_27], %39 {strides = array<i32>} : memref<4x8x8xf32, #tpu.memory_space<vmem>>, vector<4x8x8xf32>,
    %c0_28 = arith.constant 0 : index
    %c0_29 = arith.constant 0 : index
    %c0_30 = arith.constant 0 : index
    %41 = vector.load %arg13[%c0_28, %c0_29, %c0_30] : memref<4x8x1xf32, #tpu.memory_space<vmem>>, vector<4x8x1xf32>
    tpu.vector_store %arg13[%c0_28, %c0_29, %c0_30], %22 {strides = array<i32>} : memref<4x8x1xf32, #tpu.memory_space<vmem>>, vector<4x8x1xf32>,
    %c0_i32_31 = arith.constant 0 : i32
    %42 = arith.cmpi eq, %arg2, %c0_i32_31 : i32
    %43 = arith.extui %42 : i1 to i32
    %c0_i32_32 = arith.constant 0 : i32
    %44 = arith.cmpi ne, %43, %c0_i32_32 : i32
    scf.if %44 {
      %c0_33 = arith.constant 0 : index
      %c0_34 = arith.constant 0 : index
      %c0_35 = arith.constant 0 : index
      %45 = vector.load %arg15[%c0_33, %c0_34, %c0_35] : memref<4x8x8xf32, #tpu.memory_space<vmem>>, vector<4x8x8xf32>
      %c0_36 = arith.constant 0 : index
      %c0_37 = arith.constant 0 : index
      %c0_38 = arith.constant 0 : index
      %46 = vector.load %arg14[%c0_36, %c0_37, %c0_38] : memref<4x8x1xf32, #tpu.memory_space<vmem>>, vector<4x8x1xf32>
      %47 = tpu.reciprocal %46 : vector<4x8x1xf32> -> vector<4x8x1xf32>
      %48 = vector.broadcast %47 : vector<4x8x1xf32> to vector<4x8x8xf32>
      %49 = arith.mulf %45, %48 : vector<4x8x8xf32>
      %50 = tpu.transpose %49, [1, 0, 2] : vector<4x8x8xf32> -> vector<8x4x8xf32>
      %51 = vector.shape_cast %50 : vector<8x4x8xf32> to vector<8x32xf32>
      %c0_39 = arith.constant 0 : index
      %c0_40 = arith.constant 0 : index
      %c0_41 = arith.constant 0 : index
      %52 = vector.load %arg9[%c0_39, %c0_40, %c0_41] : memref<1x8x32xf32, #tpu.memory_space<vmem>>, vector<1x8x32xf32>
      %53 = vector.shape_cast %52 : vector<1x8x32xf32> to vector<8x32xf32>
      %54 = vector.shape_cast %51 : vector<8x32xf32> to vector<1x8x32xf32>
      tpu.vector_store %arg9[%c0_39, %c0_40, %c0_41], %54 {strides = array<i32>} : memref<1x8x32xf32, #tpu.memory_space<vmem>>, vector<1x8x32xf32>,
    } else {
    }
    return
  }
  func.func @transform_0(%arg0: i32, %arg1: i32, %arg2: i32) -> (i32, i32, i32) {
    %c0_i32 = arith.constant 0 : i32
    %c0_i32_0 = arith.constant 0 : i32
    %c0_i32_1 = arith.constant 0 : i32
    return %arg0, %c0_i32, %c0_i32_0 : i32, i32, i32
  }
  func.func @transform_1(%arg0: i32, %arg1: i32, %arg2: i32) -> (i32, i32, i32) {
    %c0_i32 = arith.constant 0 : i32
    %c0_i32_0 = arith.constant 0 : i32
    return %arg0, %arg1, %c0_i32 : i32, i32, i32
  }
  func.func @transform_2(%arg0: i32, %arg1: i32, %arg2: i32) -> (i32, i32) {
    %c0_i32 = arith.constant 0 : i32
    %c0_i32_0 = arith.constant 0 : i32
    %c0_i32_1 = arith.constant 0 : i32
    return %c0_i32, %c0_i32_0 : i32, i32
  }
  func.func @transform_3(%arg0: i32, %arg1: i32, %arg2: i32) -> (i32, i32) {
    %c0_i32 = arith.constant 0 : i32
    %c0_i32_0 = arith.constant 0 : i32
    %c0_i32_1 = arith.constant 0 : i32
    return %c0_i32, %c0_i32_0 : i32, i32
  }
  func.func @transform_4(%arg0: i32, %arg1: i32, %arg2: i32) -> (i32, i32) {
    %c0_i32 = arith.constant 0 : i32
    %c0_i32_0 = arith.constant 0 : i32
    %c0_i32_1 = arith.constant 0 : i32
    return %c0_i32, %c0_i32_0 : i32, i32
  }
  func.func @transform_5(%arg0: i32, %arg1: i32, %arg2: i32) -> (i32, i32) {
    %c0_i32 = arith.constant 0 : i32
    %c0_i32_0 = arith.constant 0 : i32
    %c0_i32_1 = arith.constant 0 : i32
    return %c0_i32, %c0_i32_0 : i32, i32
  }
  func.func @transform_6(%arg0: i32, %arg1: i32, %arg2: i32) -> (i32, i32, i32) {
    %c0_i32 = arith.constant 0 : i32
    %c0_i32_0 = arith.constant 0 : i32
    return %arg0, %arg1, %c0_i32 : i32, i32, i32
  }
}

</mosaic_0001>

<llo_original>
// kernel: tpu_custom_call.1
$region0: #{tpu_custom_call.1}
  #allocation0 [shape = 'u32[]', space=smem, size = 0x4, offset = 0x4, fixed_abs, tag = 'smem constant byte address 0x4 - core index']
  #allocation1 [shape = 'u32[72,128]{1,0:T(1,128)}', space=vmem, size = 0x9000, scoped, tag = 'internal scratch']
  #allocation2 [shape = 'f32[8,32]{1,0:T(8,128)}', space=vmem, size = 0x1000, scoped, tag = 'scratch operand']
  #allocation3 [shape = 'f32[8,32]{1,0:T(8,128)}', space=vmem, size = 0x1000, scoped, tag = 'scratch operand']
  #allocation4 [shape = 'f32[8,32]{1,0:T(8,128)}', space=vmem, size = 0x1000, scoped, tag = 'scratch operand']
  #allocation5 [shape = 'f32[4,8,1]{2,1,0:T(8,128)}', space=vmem, size = 0x4000, scoped, tag = 'scratch operand']
  #allocation6 [shape = 'f32[4,8,1]{2,1,0:T(8,128)}', space=vmem, size = 0x4000, scoped, tag = 'scratch operand']
  #allocation7 [shape = 'f32[4,8,8]{2,1,0:T(8,128)}', space=vmem, size = 0x4000, scoped, tag = 'scratch operand']
  %s0 = inlined_call_operand.hbm [shape: f32[2,8,32], index: 0, kind: input, shape index: {}]
  %s1 = inlined_call_operand.hbm [shape: f32[2,8,32], index: 1, kind: input, shape index: {}]
  %s2 = inlined_call_operand.hbm [shape: f32[32,32], index: 2, kind: input, shape index: {}]
  %s3 = inlined_call_operand.vmem [shape: f32[1,32], index: 3, kind: input, shape index: {}]
  %s4 = inlined_call_operand.hbm [shape: f32[32,64], index: 4, kind: input, shape index: {}]
  %s5 = inlined_call_operand.vmem [shape: f32[1,64], index: 5, kind: input, shape index: {}]
  %s6 = inlined_call_operand.hbm [shape: f32[2,8,32], index: 6, kind: output, shape index: {}]
  %s7 = sld [smem:[#allocation0]]
  $region85: #{tpu_custom_call.1} parent=0
    _
  %s9 = ssub.s32 1, %s7
  %s10 = scalar_select 0, %s9, %s7
  $region1: #{tpu_custom_call.1} parent=0
    #allocation8 [shape = 'u8[8192]{0}', space=vmem, size = 0x2000, scoped, tag = 'input window, operand 0']
    #allocation9 [shape = 's32[2]{0}', space=sflag, size = 0x8, scoped, tag = 'scoped memory for tpu_custom_call.1']
    #allocation10 [shape = 's32[2]{0}', space=sflag, size = 0x8, scoped, tag = 'scoped memory for tpu_custom_call.1']
    #allocation11 [shape = 'u8[8192]{0}', space=vmem, size = 0x2000, scoped, tag = 'input window, operand 1']
    #allocation12 [shape = 's32[2]{0}', space=sflag, size = 0x8, scoped, tag = 'scoped memory for tpu_custom_call.1']
    #allocation13 [shape = 'u8[16384]{0}', space=vmem, size = 0x4000, scoped, tag = 'input window, operand 2, single buffered']
    #allocation14 [shape = 'u8[16384]{0}', space=vmem, size = 0x4000, scoped, tag = 'input window, operand 4, single buffered']
    #allocation15 [shape = 's32[1]{0}', space=sflag, size = 0x4, scoped, tag = 'scoped memory for tpu_custom_call.1']
    #allocation16 [shape = 'u8[8192]{0}', space=vmem, size = 0x2000, scoped, tag = 'output window, operand 0']
    %11 = vsyncpa [#allocation9], 0
    %s12 = scalar_lea.sflag [#allocation9], 1
    %13 = vsyncpa %s12, 0
    %14 = vsyncpa [#allocation12], 0
    %s15 = scalar_lea.sflag [#allocation12], 1
    %16 = vsyncpa %s15, 0
    %17 = vsyncpa [#allocation15], 0
    %18 = vsyncpa [#allocation10], 0
    %s19 = scalar_lea.sflag [#allocation10], 1
    %20 = vsyncpa %s19, 0
    loop: start=0, step=1, limit=4
    $region2: #{tpu_custom_call.1} parent=1 // loop_pre_header
      _
    $region3: #{tpu_custom_call.1} parent=1 // loop_header
      %s22 = sphi 0, %s26
      %p23 = scmp.ge.s32.totalorder %s22, 4
      %s29 = sphi 0, %s48
      %s30 = sphi 0, %s44
      %s31 = sphi 0, %s40
      %s32 = sphi 0, %s29
      %s33 = sphi 0, %s30
      %s34 = sphi 0, %s31
      %s35 = sphi 0, %s32
      %s36 = sphi 0, %s33
      %s37 = sphi 0, %s34
      %s51 = sphi 0, %s53
      %s54 = sphi 0, %s51
      %s55 = sphi 0, %s54
      %s71 = sphi 0, %s55
      %s79 = sphi 0, %s81
      %s82 = sphi 0, %s79
      %s83 = sphi 0, %s82
      %s99 = sphi 0, %s83
      %s103 = sphi 0, %s103
      %s105 = sphi 0, %s103
      %s106 = sphi 0, %s105
      %s120 = sphi 0, %s106
      %s124 = sphi 0, %s124
      %s126 = sphi 0, %s124
      %s127 = sphi 0, %s126
      %s141 = sphi 0, %s127
      %s145 = sphi 0, %s145
      %s147 = sphi 0, %s145
      %s148 = sphi 0, %s147
      %s162 = sphi 0, %s148
      %s166 = sphi 0, %s166
      %s168 = sphi 0, %s166
      %s169 = sphi 0, %s168
      %s183 = sphi 0, %s169
      %s191 = sphi 0, %s193
      %s194 = sphi 0, %s191
      %s195 = sphi 0, %s194
      %s211 = sphi 0, %s195
    $region4: #{tpu_custom_call.1} parent=1 // loop_header_branch
      %25 = sbr.rel (%p23) target = $region8
    $region5: #{tpu_custom_call.1} parent=1 // loop_body
      %s27 = ssub.s32 %s22, 1
      %s28 = ssub.s32 %s22, 2
      %s38 = sadd.s32 1, %s31
      %p39 = scmp.ge.s32.totalorder %s38, 1
      %s40 = scalar_select %p39, 0, %s38
      %s41 = sadd.s32 1, %s30
      %s42 = scalar_select %p39, %s41, %s30
      %p43 = scmp.ge.s32.totalorder %s42, 1
      %s44 = scalar_select %p43, 0, %s42
      %s45 = sadd.s32 1, %s29
      %s46 = scalar_select %p43, %s45, %s29
      %p47 = scmp.ge.s32.totalorder %s46, 2
      %s48 = scalar_select %p47, 0, %s46
      %s49 = ssub.s32 %s29, %s48
      %p50 = scmp.eq.s32.totalorder %s49, 0
      %s52 = sadd.s32 %s51, 1
      %s53 = scalar_select %p50, %s51, %s52
      %p56 = pneg %p50
      %p57 = scmp.eq.s32.totalorder %s22, 1
      %p58 = por %p56, %p57
      %p59 = scmp.ne.s32.totalorder %s51, %s54
      %p60 = scmp.eq.s32.totalorder %s22, 0
      %p61 = por %p59, %p60
      %p62 = scmp.ne.s32.totalorder %s51, %s54
      %p63 = scmp.eq.s32.totalorder %s27, 1
      %p64 = por %p62, %p63
      %p65 = scmp.ne.s32.totalorder %s54, %s55
      %p66 = scmp.eq.s32.totalorder %s27, 0
      %p67 = por %p65, %p66
      %p68 = scmp.ne.s32.totalorder %s54, %s55
      %p69 = scmp.eq.s32.totalorder %s28, 1
      %p70 = por %p68, %p69
      %p72 = scmp.ne.s32.totalorder %s55, %s71
      %p73 = scmp.eq.s32.totalorder %s28, 0
      %p74 = por %p72, %p73
      %s75 = ssub.s32 %s29, %s48
      %s76 = ssub.s32 %s30, %s44
      %s77 = sor.u32 %s75, %s76
      %p78 = scmp.eq.s32.totalorder %s77, 0
      %s80 = sadd.s32 %s79, 1
      %s81 = scalar_select %p78, %s79, %s80
      %p84 = pneg %p78
      %p85 = scmp.eq.s32.totalorder %s22, 1
      %p86 = por %p84, %p85
      %p87 = scmp.ne.s32.totalorder %s79, %s82
      %p88 = scmp.eq.s32.totalorder %s22, 0
      %p89 = por %p87, %p88
      %p90 = scmp.ne.s32.totalorder %s79, %s82
      %p91 = scmp.eq.s32.totalorder %s27, 1
      %p92 = por %p90, %p91
      %p93 = scmp.ne.s32.totalorder %s82, %s83
      %p94 = scmp.eq.s32.totalorder %s27, 0
      %p95 = por %p93, %p94
      %p96 = scmp.ne.s32.totalorder %s82, %s83
      %p97 = scmp.eq.s32.totalorder %s28, 1
      %p98 = por %p96, %p97
      %p100 = scmp.ne.s32.totalorder %s83, %s99
      %p101 = scmp.eq.s32.totalorder %s28, 0
      %p102 = por %p100, %p101
      %s104 = sadd.s32 %s103, 1
      %p107 = scmp.eq.s32.totalorder %s22, 1
      %p108 = scmp.ne.s32.totalorder %s103, %s105
      %p109 = scmp.eq.s32.totalorder %s22, 0
      %p110 = por %p108, %p109
      %p111 = scmp.ne.s32.totalorder %s103, %s105
      %p112 = scmp.eq.s32.totalorder %s27, 1
      %p113 = por %p111, %p112
      %p114 = scmp.ne.s32.totalorder %s105, %s106
      %p115 = scmp.eq.s32.totalorder %s27, 0
      %p116 = por %p114, %p115
      %p117 = scmp.ne.s32.totalorder %s105, %s106
      %p118 = scmp.eq.s32.totalorder %s28, 1
      %p119 = por %p117, %p118
      %p121 = scmp.ne.s32.totalorder %s106, %s120
      %p122 = scmp.eq.s32.totalorder %s28, 0
      %p123 = por %p121, %p122
      %s125 = sadd.s32 %s124, 1
      %p128 = scmp.eq.s32.totalorder %s22, 1
      %p129 = scmp.ne.s32.totalorder %s124, %s126
      %p130 = scmp.eq.s32.totalorder %s22, 0
      %p131 = por %p129, %p130
      %p132 = scmp.ne.s32.totalorder %s124, %s126
      %p133 = scmp.eq.s32.totalorder %s27, 1
      %p134 = por %p132, %p133
      %p135 = scmp.ne.s32.totalorder %s126, %s127
      %p136 = scmp.eq.s32.totalorder %s27, 0
      %p137 = por %p135, %p136
      %p138 = scmp.ne.s32.totalorder %s126, %s127
      %p139 = scmp.eq.s32.totalorder %s28, 1
      %p140 = por %p138, %p139
      %p142 = scmp.ne.s32.totalorder %s127, %s141
      %p143 = scmp.eq.s32.totalorder %s28, 0
      %p144 = por %p142, %p143
      %s146 = sadd.s32 %s145, 1
      %p149 = scmp.eq.s32.totalorder %s22, 1
      %p150 = scmp.ne.s32.totalorder %s145, %s147
      %p151 = scmp.eq.s32.totalorder %s22, 0
      %p152 = por %p150, %p151
      %p153 = scmp.ne.s32.totalorder %s145, %s147
      %p154 = scmp.eq.s32.totalorder %s27, 1
      %p155 = por %p153, %p154
      %p156 = scmp.ne.s32.totalorder %s147, %s148
      %p157 = scmp.eq.s32.totalorder %s27, 0
      %p158 = por %p156, %p157
      %p159 = scmp.ne.s32.totalorder %s147, %s148
      %p160 = scmp.eq.s32.totalorder %s28, 1
      %p161 = por %p159, %p160
      %p163 = scmp.ne.s32.totalorder %s148, %s162
      %p164 = scmp.eq.s32.totalorder %s28, 0
      %p165 = por %p163, %p164
      %s167 = sadd.s32 %s166, 1
      %p170 = scmp.eq.s32.totalorder %s22, 1
      %p171 = scmp.ne.s32.totalorder %s166, %s168
      %p172 = scmp.eq.s32.totalorder %s22, 0
      %p173 = por %p171, %p172
      %p174 = scmp.ne.s32.totalorder %s166, %s168
      %p175 = scmp.eq.s32.totalorder %s27, 1
      %p176 = por %p174, %p175
      %p177 = scmp.ne.s32.totalorder %s168, %s169
      %p178 = scmp.eq.s32.totalorder %s27, 0
      %p179 = por %p177, %p178
      %p180 = scmp.ne.s32.totalorder %s168, %s169
      %p181 = scmp.eq.s32.totalorder %s28, 1
      %p182 = por %p180, %p181
      %p184 = scmp.ne.s32.totalorder %s169, %s183
      %p185 = scmp.eq.s32.totalorder %s28, 0
      %p186 = por %p184, %p185
      %s187 = ssub.s32 %s29, %s48
      %s188 = ssub.s32 %s30, %s44
      %s189 = sor.u32 %s187, %s188
      %p190 = scmp.eq.s32.totalorder %s189, 0
      %s192 = sadd.s32 %s191, 1
      %s193 = scalar_select %p190, %s191, %s192
      %p196 = pneg %p190
      %p197 = scmp.eq.s32.totalorder %s22, 1
      %p198 = por %p196, %p197
      %p199 = scmp.ne.s32.totalorder %s191, %s194
      %p200 = scmp.eq.s32.totalorder %s22, 0
      %p201 = por %p199, %p200
      %p202 = scmp.ne.s32.totalorder %s191, %s194
      %p203 = scmp.eq.s32.totalorder %s27, 1
      %p204 = por %p202, %p203
      %p205 = scmp.ne.s32.totalorder %s194, %s195
      %p206 = scmp.eq.s32.totalorder %s27, 0
      %p207 = por %p205, %p206
      %p208 = scmp.ne.s32.totalorder %s194, %s195
      %p209 = scmp.eq.s32.totalorder %s28, 1
      %p210 = por %p208, %p209
      %p212 = scmp.ne.s32.totalorder %s195, %s211
      %p213 = scmp.eq.s32.totalorder %s28, 0
      %p214 = por %p212, %p213
      %p215 = scmp.le.s32.totalorder 1, %s22
      %p216 = scmp.lt.s32.totalorder %s22, 3
      %p217 = pnand %p215, %p216
      %p218 = pneg %p217
      // Predicated region
      $region9: #{tpu_custom_call.1} parent=5 // pred_check
        _
      $region10: #{tpu_custom_call.1} parent=5 // pred_check_branch
        %220 = sbr.rel (%p217) target = $region12
      $region11: #{tpu_custom_call.1} parent=5 // pred_region
        %s221 = ssub.s32 %s22, 1
        // Predicated region
        $region13: #{tpu_custom_call.1} parent=11 // pred_check
          %p222 = pneg %p116
        $region14: #{tpu_custom_call.1} parent=11 // pred_check_branch
          %224 = sbr.rel (%p222) target = $region16
        $region15: #{tpu_custom_call.1} parent=11 // pred_region
          %226 = vsyncadd [#allocation12], 0
          %s227 = sshll.u32 %s2, 4
          %s228 = int_to_ptr.hbm [resolvable:$true] %s227
          %s229 = sshll.u32 [#allocation13], 4
          %s230 = int_to_ptr.vmem [resolvable:$true] %s229
          %235 = dma.hbm_to_vmem [thread:$0]  %s228, 512, %s230, [#allocation12], 128, 128, 8
        $region16: #{tpu_custom_call.1} parent=11 // pred_fallthru
          _
        // Predicated region
        $region17: #{tpu_custom_call.1} parent=11 // pred_check
          %p236 = pneg %p137
        $region18: #{tpu_custom_call.1} parent=11 // pred_check_branch
          %238 = sbr.rel (%p236) target = $region20
        $region19: #{tpu_custom_call.1} parent=11 // pred_region
          _
        $region20: #{tpu_custom_call.1} parent=11 // pred_fallthru
          _
        // Predicated region
        $region21: #{tpu_custom_call.1} parent=11 // pred_check
          %p239 = pneg %p158
        $region22: #{tpu_custom_call.1} parent=11 // pred_check_branch
          %241 = sbr.rel (%p239) target = $region24
        $region23: #{tpu_custom_call.1} parent=11 // pred_region
          %243 = vsyncadd [#allocation15], 0
          %s244 = sshll.u32 %s4, 4
          %s245 = int_to_ptr.hbm [resolvable:$true] %s244
          %s246 = sshll.u32 [#allocation14], 4
          %s247 = int_to_ptr.vmem [resolvable:$true] %s246
          %252 = dma.hbm_to_vmem [thread:$0]  %s245, 512, %s247, [#allocation15], 128, 128, 8
        $region24: #{tpu_custom_call.1} parent=11 // pred_fallthru
          _
        // Predicated region
        $region25: #{tpu_custom_call.1} parent=11 // pred_check
          %p253 = pneg %p179
        $region26: #{tpu_custom_call.1} parent=11 // pred_check_branch
          %255 = sbr.rel (%p253) target = $region28
        $region27: #{tpu_custom_call.1} parent=11 // pred_region
          _
        $region28: #{tpu_custom_call.1} parent=11 // pred_fallthru
          _
      $region12: #{tpu_custom_call.1} parent=5 // pred_fallthru
        _
      %p256 = scmp.lt.s32.totalorder %s22, 2
      // Predicated region
      $region29: #{tpu_custom_call.1} parent=5 // pred_check
        %p257 = pneg %p256
      $region30: #{tpu_custom_call.1} parent=5 // pred_check_branch
        %259 = sbr.rel (%p257) target = $region32
      $region31: #{tpu_custom_call.1} parent=5 // pred_region
        // Predicated region
        $region33: #{tpu_custom_call.1} parent=31 // pred_check
          %p260 = pneg %p61
        $region34: #{tpu_custom_call.1} parent=31 // pred_check_branch
          %262 = sbr.rel (%p260) target = $region36
        $region35: #{tpu_custom_call.1} parent=31 // pred_region
          %s263 = sand.u32 %s51, 1
          %s264 = scalar_lea.sflag [#allocation9], %s263
          %s265 = sand.u32 %s51, 1
          %s266 = smul.addr %s265, 8
          %s267 = scalar_lea.vmem [#allocation8], %s266
          %269 = vsyncadd %s264, 0
          %s270 = smul.addr %s29, 8
          %s271 = scalar_lea.hbm %s0, %s270
          %s273 = sshll.u32 %s271, 4
          %s274 = int_to_ptr.hbm [resolvable:$true] %s273
          %s275 = sshll.u32 %s267, 4
          %s276 = int_to_ptr.vmem [resolvable:$true] %s275
          %278 = dma.hbm_to_vmem [thread:$0]  %s274, 128, %s276, %s264
        $region36: #{tpu_custom_call.1} parent=31 // pred_fallthru
          _
        // Predicated region
        $region37: #{tpu_custom_call.1} parent=31 // pred_check
          %p279 = pneg %p89
        $region38: #{tpu_custom_call.1} parent=31 // pred_check_branch
          %281 = sbr.rel (%p279) target = $region40
        $region39: #{tpu_custom_call.1} parent=31 // pred_region
          %s282 = sand.u32 %s22, 1
          %s283 = scalar_lea.sflag [#allocation12], %s282
          %s284 = sand.u32 %s79, 1
          %s285 = smul.addr %s284, 8
          %s286 = scalar_lea.vmem [#allocation11], %s285
          %288 = vsyncadd %s283, 0
          %s289 = sadd.s32 %s30, %s29
          %s290 = smul.addr %s289, 8
          %s291 = scalar_lea.hbm %s1, %s290
          %s293 = sshll.u32 %s291, 4
          %s294 = int_to_ptr.hbm [resolvable:$true] %s293
          %s295 = sshll.u32 %s286, 4
          %s296 = int_to_ptr.vmem [resolvable:$true] %s295
          %298 = dma.hbm_to_vmem [thread:$0]  %s294, 128, %s296, %s283
        $region40: #{tpu_custom_call.1} parent=31 // pred_fallthru
          _
      $region32: #{tpu_custom_call.1} parent=5 // pred_fallthru
        _
      %p299 = scmp.le.s32.totalorder 1, %s22
      %p300 = scmp.lt.s32.totalorder %s22, 3
      %p301 = pnand %p299, %p300
      %p302 = pneg %p301
      // Predicated region
      $region41: #{tpu_custom_call.1} parent=5 // pred_check
        _
      $region42: #{tpu_custom_call.1} parent=5 // pred_check_branch
        %304 = sbr.rel (%p301) target = $region44
      $region43: #{tpu_custom_call.1} parent=5 // pred_region
        %s305 = ssub.s32 %s22, 1
        %s306 = sand.u32 %s54, 1
        %s307 = scalar_lea.sflag [#allocation9], %s306
        %s308 = sand.u32 %s54, 1
        %s309 = smul.addr %s308, 8
        %s310 = scalar_lea.vmem [#allocation8], %s309
        // Predicated region
        $region45: #{tpu_custom_call.1} parent=43 // pred_check
          %p311 = pneg %p67
        $region46: #{tpu_custom_call.1} parent=43 // pred_check_branch
          %313 = sbr.rel (%p311) target = $region48
        $region47: #{tpu_custom_call.1} parent=43 // pred_region
          %315 = dma.done %s307, 128
        $region48: #{tpu_custom_call.1} parent=43 // pred_fallthru
          _
        %s316 = sand.u32 %s27, 1
        %s317 = scalar_lea.sflag [#allocation12], %s316
        %s318 = sand.u32 %s82, 1
        %s319 = smul.addr %s318, 8
        %s320 = scalar_lea.vmem [#allocation11], %s319
        // Predicated region
        $region49: #{tpu_custom_call.1} parent=43 // pred_check
          %p321 = pneg %p95
        $region50: #{tpu_custom_call.1} parent=43 // pred_check_branch
          %323 = sbr.rel (%p321) target = $region52
        $region51: #{tpu_custom_call.1} parent=43 // pred_region
          %325 = dma.done %s317, 128
        $region52: #{tpu_custom_call.1} parent=43 // pred_fallthru
          _
        // Predicated region
        $region53: #{tpu_custom_call.1} parent=43 // pred_check
          %p326 = pneg %p116
        $region54: #{tpu_custom_call.1} parent=43 // pred_check_branch
          %328 = sbr.rel (%p326) target = $region56
        $region55: #{tpu_custom_call.1} parent=43 // pred_region
          %330 = dma.done [#allocation12], 512
        $region56: #{tpu_custom_call.1} parent=43 // pred_fallthru
          _
        // Predicated region
        $region57: #{tpu_custom_call.1} parent=43 // pred_check
          %p331 = pneg %p158
        $region58: #{tpu_custom_call.1} parent=43 // pred_check_branch
          %333 = sbr.rel (%p331) target = $region60
        $region59: #{tpu_custom_call.1} parent=43 // pred_region
          %335 = dma.done [#allocation15], 512
        $region60: #{tpu_custom_call.1} parent=43 // pred_fallthru
          _
        %s336 = sand.u32 %s54, 1
        %s337 = scalar_lea.sflag [#allocation9], %s336
        %s338 = sand.u32 %s54, 1
        %s339 = smul.addr %s338, 8
        %s340 = scalar_lea.vmem [#allocation8], %s339
        %p341 = pneg %p67
        %p342 = pneg %p64
        %s343 = sand.u32 %s27, 1
        %s344 = scalar_lea.sflag [#allocation12], %s343
        %s345 = sand.u32 %s82, 1
        %s346 = smul.addr %s345, 8
        %s347 = scalar_lea.vmem [#allocation11], %s346
        %p348 = pneg %p95
        %p349 = pneg %p92
        %p350 = pneg %p116
        %p351 = pneg %p113
        %p352 = pneg %p137
        %p353 = pneg %p134
        %p354 = pneg %p158
        %p355 = pneg %p155
        %p356 = pneg %p179
        %p357 = pneg %p176
        %p358 = pneg %p207
        %p359 = pneg %p204
        %s360 = sand.u32 %s194, 1
        %s361 = scalar_lea.sflag [#allocation10], %s360
        %s362 = sand.u32 %s194, 1
        %s363 = smul.addr %s362, 8
        %s364 = scalar_lea.vmem [#allocation16], %s363
        %p365 = scmp.eq.s32.totalorder %s33, 0
        %p366 = scmp.eq.s32.totalorder %s34, 0
        %p367 = pnand %p365, %p366
        %p368 = pneg %p367
        // Predicated region
        $region61: #{tpu_custom_call.1} parent=43 // pred_check
          _
        $region62: #{tpu_custom_call.1} parent=43 // pred_check_branch
          %370 = sbr.rel (%p367) target = $region64
        $region63: #{tpu_custom_call.1} parent=43 // pred_region
          %v371 = vld [vmem:[%s310] sm:$0xff]
          %v372 = vld [vmem:[#allocation14] sm:$0xff]
          %v373 = vld [vmem:[#allocation14 + $0x8] sm:$0xff]
          %v374 = vld [vmem:[#allocation14 + $0x10] sm:$0xff]
          %v375 = vld [vmem:[#allocation14 + $0x18] sm:$0xff]
          %v376 = vld [vmem:[%s5] sm:$0x1]
          %v378 = vperm.slane %v376, 0
          %vm380 = vcmask 261120
          %v382 = vsel %vm380, %v371, 0
          %384 = vmatpush.msra.mxu0 0.0
          %385 = vmatpush.msra.mxu0 0.0
          %386 = vmatpush.msra.mxu0 0.0
          %387 = vmatpush.msra.mxu0 0.0
          %388 = vmatpush.msra.mxu0 0.0
          %389 = vmatpush.msra.mxu0 0.0
          %390 = vmatpush.msra.mxu0 0.0
          %391 = vmatpush.msra.mxu0 0.0
          %392 = vmatpush.msra.mxu0 0.0
          %393 = vmatpush.msra.mxu0 0.0
          %394 = vmatpush.msra.mxu0 0.0
          %395 = vmatpush.msra.mxu0 0.0
          %396 = vmatpush.msra.mxu0 %v375
          %397 = vmatpush.msra.mxu0 %v374
          %398 = vmatpush.msra.mxu0 %v373
          %399 = vmatpush.msra.mxu0 %v372
          %400 = vmatmul.f32.gmra.mxu0 %v382
          %v401 = vpop.f32.mrf.mxu0
          %v402 = vadd.f32 %v378, %v401
          %403 = vdwg.mxu0
          %404 = vst.msk [vmem:[#allocation2] sm:$0xff] %vm380, %v402
          %406 = vrot.lane.b32.xlu0 %v402, 96
          %v407 = vpop.permute.xlu0 %406
          %409 = vst.msk [vmem:[#allocation3] sm:$0xff] %vm380, %v407
        $region64: #{tpu_custom_call.1} parent=43 // pred_fallthru
          _
        // Predicated region
        $region65: #{tpu_custom_call.1} parent=43 // pred_check
          %p410 = pneg %p366
        $region66: #{tpu_custom_call.1} parent=43 // pred_check_branch
          %412 = sbr.rel (%p410) target = $region68
        $region67: #{tpu_custom_call.1} parent=43 // pred_region
          %v413 = vld [vmem:[%s320] sm:$0xff]
          %v414 = vld [vmem:[#allocation13] sm:$0xff]
          %v415 = vld [vmem:[#allocation13 + $0x8] sm:$0xff]
          %v416 = vld [vmem:[#allocation13 + $0x10] sm:$0xff]
          %v417 = vld [vmem:[#allocation13 + $0x18] sm:$0xff]
          %v418 = vld [vmem:[%s3] sm:$0x1]
          %v420 = vperm.slane %v418, 0
          %vm422 = vcmask 261120
          %v424 = vsel %vm422, %v413, 0
          %426 = vmatpush.msra.mxu0 0.0
          %427 = vmatpush.msra.mxu0 0.0
          %428 = vmatpush.msra.mxu0 0.0
          %429 = vmatpush.msra.mxu0 0.0
          %430 = vmatpush.msra.mxu0 0.0
          %431 = vmatpush.msra.mxu0 0.0
          %432 = vmatpush.msra.mxu0 0.0
          %433 = vmatpush.msra.mxu0 0.0
          %434 = vmatpush.msra.mxu0 0.0
          %435 = vmatpush.msra.mxu0 0.0
          %436 = vmatpush.msra.mxu0 0.0
          %437 = vmatpush.msra.mxu0 0.0
          %438 = vmatpush.msra.mxu0 %v417
          %439 = vmatpush.msra.mxu0 %v416
          %440 = vmatpush.msra.mxu0 %v415
          %441 = vmatpush.msra.mxu0 %v414
          %442 = vmatmul.f32.gmra.mxu0 %v424
          %v443 = vpop.f32.mrf.mxu0
          %v444 = vadd.f32 %v420, %v443
          %445 = vdwg.mxu0
          %v446 = vmul.f32 %v444, 0.35355338
          %447 = vst.msk [vmem:[#allocation4] sm:$0xff] %vm422, %v446
          %vm448 = vcmask 7168
          %449 = vst.msk [vmem:[#allocation5] sm:$0xff] %vm448, -inf
          %450 = vst.msk [vmem:[#allocation5 + $0x8] sm:$0xff] %vm448, -inf
          %451 = vst.msk [vmem:[#allocation5 + $0x10] sm:$0xff] %vm448, -inf
          %452 = vst.msk [vmem:[#allocation5 + $0x18] sm:$0xff] %vm448, -inf
          %453 = vst.msk [vmem:[#allocation6] sm:$0xff] %vm448, 0.0
          %454 = vst.msk [vmem:[#allocation6 + $0x8] sm:$0xff] %vm448, 0.0
          %455 = vst.msk [vmem:[#allocation6 + $0x10] sm:$0xff] %vm448, 0.0
          %456 = vst.msk [vmem:[#allocation6 + $0x18] sm:$0xff] %vm448, 0.0
          %vm457 = vcmask 64512
          %458 = vst.msk [vmem:[#allocation7] sm:$0xff] %vm457, 0.0
          %459 = vst.msk [vmem:[#allocation7 + $0x8] sm:$0xff] %vm457, 0.0
          %460 = vst.msk [vmem:[#allocation7 + $0x10] sm:$0xff] %vm457, 0.0
          %461 = vst.msk [vmem:[#allocation7 + $0x18] sm:$0xff] %vm457, 0.0
        $region68: #{tpu_custom_call.1} parent=43 // pred_fallthru
          _
        %s462 = smul.u32 %s34, 8
        %v463 = vld [vmem:[#allocation4] sm:$0xff]
        %465 = vrot.lane.b32.xlu0 %v463, 120
        %v466 = vpop.permute.xlu0 %465
        %467 = vrot.lane.b32.xlu0 %v463, 112
        %v468 = vpop.permute.xlu0 %467
        %469 = vrot.lane.b32.xlu0 %v463, 104
        %v470 = vpop.permute.xlu0 %469
        %s471 = scalar_lea.vmem [#allocation2], %s462
        %v472 = vld [vmem:[%s471] sm:$0xff]
        %474 = vrot.lane.b32.xlu0 %v472, 120
        %v475 = vpop.permute.xlu0 %474
        %477 = vrot.lane.b32.xlu0 %v472, 112
        %v478 = vpop.permute.xlu0 %477
        %480 = vrot.lane.b32.xlu0 %v472, 104
        %v481 = vpop.permute.xlu0 %480
        %s483 = scalar_lea.vmem [#allocation3], %s462
        %v484 = vld [vmem:[%s483] sm:$0xff]
        %486 = vrot.lane.b32.xlu0 %v484, 120
        %v487 = vpop.permute.xlu0 %486
        %489 = vrot.lane.b32.xlu0 %v484, 112
        %v490 = vpop.permute.xlu0 %489
        %492 = vrot.lane.b32.xlu0 %v484, 104
        %v493 = vpop.permute.xlu0 %492
        %495 = vxpose.xlu0.b32.start [1/16] %v472, 128
        %496 = vxpose.xlu0.b32.cont [2/16] 0.0, 128
        %497 = vxpose.xlu0.b32.cont [3/16] 0.0, 128
        %498 = vxpose.xlu0.b32.cont [4/16] 0.0, 128
        %499 = vxpose.xlu0.b32.cont [5/16] 0.0, 128
        %500 = vxpose.xlu0.b32.cont [6/16] 0.0, 128
        %501 = vxpose.xlu0.b32.cont [7/16] 0.0, 128
        %502 = vxpose.xlu0.b32.cont [8/16] 0.0, 128
        %503 = vxpose.xlu0.b32.cont [9/16] 0.0, 128
        %504 = vxpose.xlu0.b32.cont [10/16] 0.0, 128
        %505 = vxpose.xlu0.b32.cont [11/16] 0.0, 128
        %506 = vxpose.xlu0.b32.cont [12/16] 0.0, 128
        %507 = vxpose.xlu0.b32.cont [13/16] 0.0, 128
        %508 = vxpose.xlu0.b32.cont [14/16] 0.0, 128
        %509 = vxpose.xlu0.b32.cont [15/16] 0.0, 128
        %510 = vxpose.xlu0.b32.end [16/16] 0.0, 128
        %v511 = vpop.trf.xlu0
        %v512 = vpop.trf.xlu0
        %v513 = vpop.trf.xlu0
        %v514 = vpop.trf.xlu0
        %v515 = vpop.trf.xlu0
        %v516 = vpop.trf.xlu0
        %v517 = vpop.trf.xlu0
        %v518 = vpop.trf.xlu0
        %v519 = vpop.trf.xlu0
        %v520 = vpop.trf.xlu0
        %v521 = vpop.trf.xlu0
        %v522 = vpop.trf.xlu0
        %v523 = vpop.trf.xlu0
        %v524 = vpop.trf.xlu0
        %v525 = vpop.trf.xlu0
        %v526 = vpop.trf.xlu0
        %527 = vxpose.xlu0.b32.start [1/16] %v475, 128
        %528 = vxpose.xlu0.b32.cont [2/16] 0.0, 128
        %529 = vxpose.xlu0.b32.cont [3/16] 0.0, 128
        %530 = vxpose.xlu0.b32.cont [4/16] 0.0, 128
        %531 = vxpose.xlu0.b32.cont [5/16] 0.0, 128
        %532 = vxpose.xlu0.b32.cont [6/16] 0.0, 128
        %533 = vxpose.xlu0.b32.cont [7/16] 0.0, 128
        %534 = vxpose.xlu0.b32.cont [8/16] 0.0, 128
        %535 = vxpose.xlu0.b32.cont [9/16] 0.0, 128
        %536 = vxpose.xlu0.b32.cont [10/16] 0.0, 128
        %537 = vxpose.xlu0.b32.cont [11/16] 0.0, 128
        %538 = vxpose.xlu0.b32.cont [12/16] 0.0, 128
        %539 = vxpose.xlu0.b32.cont [13/16] 0.0, 128
        %540 = vxpose.xlu0.b32.cont [14/16] 0.0, 128
        %541 = vxpose.xlu0.b32.cont [15/16] 0.0, 128
        %542 = vxpose.xlu0.b32.end [16/16] 0.0, 128
        %v543 = vpop.trf.xlu0
        %v544 = vpop.trf.xlu0
        %v545 = vpop.trf.xlu0
        %v546 = vpop.trf.xlu0
        %v547 = vpop.trf.xlu0
        %v548 = vpop.trf.xlu0
        %v549 = vpop.trf.xlu0
        %v550 = vpop.trf.xlu0
        %v551 = vpop.trf.xlu0
        %v552 = vpop.trf.xlu0
        %v553 = vpop.trf.xlu0
        %v554 = vpop.trf.xlu0
        %v555 = vpop.trf.xlu0
        %v556 = vpop.trf.xlu0
        %v557 = vpop.trf.xlu0
        %v558 = vpop.trf.xlu0
        %559 = vxpose.xlu0.b32.start [1/16] %v478, 128
        %560 = vxpose.xlu0.b32.cont [2/16] 0.0, 128
        %561 = vxpose.xlu0.b32.cont [3/16] 0.0, 128
        %562 = vxpose.xlu0.b32.cont [4/16] 0.0, 128
        %563 = vxpose.xlu0.b32.cont [5/16] 0.0, 128
        %564 = vxpose.xlu0.b32.cont [6/16] 0.0, 128
        %565 = vxpose.xlu0.b32.cont [7/16] 0.0, 128
        %566 = vxpose.xlu0.b32.cont [8/16] 0.0, 128
        %567 = vxpose.xlu0.b32.cont [9/16] 0.0, 128
        %568 = vxpose.xlu0.b32.cont [10/16] 0.0, 128
        %569 = vxpose.xlu0.b32.cont [11/16] 0.0, 128
        %570 = vxpose.xlu0.b32.cont [12/16] 0.0, 128
        %571 = vxpose.xlu0.b32.cont [13/16] 0.0, 128
        %572 = vxpose.xlu0.b32.cont [14/16] 0.0, 128
        %573 = vxpose.xlu0.b32.cont [15/16] 0.0, 128
        %574 = vxpose.xlu0.b32.end [16/16] 0.0, 128
        %v575 = vpop.trf.xlu0
        %v576 = vpop.trf.xlu0
        %v577 = vpop.trf.xlu0
        %v578 = vpop.trf.xlu0
        %v579 = vpop.trf.xlu0
        %v580 = vpop.trf.xlu0
        %v581 = vpop.trf.xlu0
        %v582 = vpop.trf.xlu0
        %v583 = vpop.trf.xlu0
        %v584 = vpop.trf.xlu0
        %v585 = vpop.trf.xlu0
        %v586 = vpop.trf.xlu0
        %v587 = vpop.trf.xlu0
        %v588 = vpop.trf.xlu0
        %v589 = vpop.trf.xlu0
        %v590 = vpop.trf.xlu0
        %591 = vxpose.xlu0.b32.start [1/16] %v481, 128
        %592 = vxpose.xlu0.b32.cont [2/16] 0.0, 128
        %593 = vxpose.xlu0.b32.cont [3/16] 0.0, 128
        %594 = vxpose.xlu0.b32.cont [4/16] 0.0, 128
        %595 = vxpose.xlu0.b32.cont [5/16] 0.0, 128
        %596 = vxpose.xlu0.b32.cont [6/16] 0.0, 128
        %597 = vxpose.xlu0.b32.cont [7/16] 0.0, 128
        %598 = vxpose.xlu0.b32.cont [8/16] 0.0, 128
        %599 = vxpose.xlu0.b32.cont [9/16] 0.0, 128
        %600 = vxpose.xlu0.b32.cont [10/16] 0.0, 128
        %601 = vxpose.xlu0.b32.cont [11/16] 0.0, 128
        %602 = vxpose.xlu0.b32.cont [12/16] 0.0, 128
        %603 = vxpose.xlu0.b32.cont [13/16] 0.0, 128
        %604 = vxpose.xlu0.b32.cont [14/16] 0.0, 128
        %605 = vxpose.xlu0.b32.cont [15/16] 0.0, 128
        %606 = vxpose.xlu0.b32.end [16/16] 0.0, 128
        %v607 = vpop.trf.xlu0
        %v608 = vpop.trf.xlu0
        %v609 = vpop.trf.xlu0
        %v610 = vpop.trf.xlu0
        %v611 = vpop.trf.xlu0
        %v612 = vpop.trf.xlu0
        %v613 = vpop.trf.xlu0
        %v614 = vpop.trf.xlu0
        %v615 = vpop.trf.xlu0
        %v616 = vpop.trf.xlu0
        %v617 = vpop.trf.xlu0
        %v618 = vpop.trf.xlu0
        %v619 = vpop.trf.xlu0
        %v620 = vpop.trf.xlu0
        %v621 = vpop.trf.xlu0
        %v622 = vpop.trf.xlu0
        %vm623 = vcmask 64512
        %v624 = vsel %vm623, %v463, 0
        %626 = vmatpush.msra.mxu0 0.0
        %627 = vmatpush.msra.mxu0 0.0
        %628 = vmatpush.msra.mxu0 0.0
        %629 = vmatpush.msra.mxu0 0.0
        %630 = vmatpush.msra.mxu0 0.0
        %631 = vmatpush.msra.mxu0 0.0
        %632 = vmatpush.msra.mxu0 0.0
        %633 = vmatpush.msra.mxu0 0.0
        %634 = vmatpush.msra.mxu0 0.0
        %635 = vmatpush.msra.mxu0 0.0
        %636 = vmatpush.msra.mxu0 0.0
        %637 = vmatpush.msra.mxu0 0.0
        %638 = vmatpush.msra.mxu0 0.0
        %639 = vmatpush.msra.mxu0 0.0
        %640 = vmatpush.msra.mxu0 0.0
        %641 = vmatpush.msra.mxu0 %v511
        %642 = vmatmul.f32.gmra.mxu0 %v624
        %v643 = vpop.f32.mrf.mxu0
        %v644 = vadd.f32 0.0, %v643
        %645 = vdwg.mxu0
        %v646 = vsel %vm623, %v466, 0
        %648 = vmatpush.msra.mxu0 0.0
        %649 = vmatpush.msra.mxu0 0.0
        %650 = vmatpush.msra.mxu0 0.0
        %651 = vmatpush.msra.mxu0 0.0
        %652 = vmatpush.msra.mxu0 0.0
        %653 = vmatpush.msra.mxu0 0.0
        %654 = vmatpush.msra.mxu0 0.0
        %655 = vmatpush.msra.mxu0 0.0
        %656 = vmatpush.msra.mxu0 0.0
        %657 = vmatpush.msra.mxu0 0.0
        %658 = vmatpush.msra.mxu0 0.0
        %659 = vmatpush.msra.mxu0 0.0
        %660 = vmatpush.msra.mxu0 0.0
        %661 = vmatpush.msra.mxu0 0.0
        %662 = vmatpush.msra.mxu0 0.0
        %663 = vmatpush.msra.mxu0 %v543
        %664 = vmatmul.f32.gmra.mxu0 %v646
        %v665 = vpop.f32.mrf.mxu0
        %v666 = vadd.f32 0.0, %v665
        %667 = vdwg.mxu0
        %v668 = vsel %vm623, %v468, 0
        %670 = vmatpush.msra.mxu0 0.0
        %671 = vmatpush.msra.mxu0 0.0
        %672 = vmatpush.msra.mxu0 0.0
        %673 = vmatpush.msra.mxu0 0.0
        %674 = vmatpush.msra.mxu0 0.0
        %675 = vmatpush.msra.mxu0 0.0
        %676 = vmatpush.msra.mxu0 0.0
        %677 = vmatpush.msra.mxu0 0.0
        %678 = vmatpush.msra.mxu0 0.0
        %679 = vmatpush.msra.mxu0 0.0
        %680 = vmatpush.msra.mxu0 0.0
        %681 = vmatpush.msra.mxu0 0.0
        %682 = vmatpush.msra.mxu0 0.0
        %683 = vmatpush.msra.mxu0 0.0
        %684 = vmatpush.msra.mxu0 0.0
        %685 = vmatpush.msra.mxu0 %v575
        %686 = vmatmul.f32.gmra.mxu0 %v668
        %v687 = vpop.f32.mrf.mxu0
        %v688 = vadd.f32 0.0, %v687
        %689 = vdwg.mxu0
        %v690 = vsel %vm623, %v470, 0
        %692 = vmatpush.msra.mxu0 0.0
        %693 = vmatpush.msra.mxu0 0.0
        %694 = vmatpush.msra.mxu0 0.0
        %695 = vmatpush.msra.mxu0 0.0
        %696 = vmatpush.msra.mxu0 0.0
        %697 = vmatpush.msra.mxu0 0.0
        %698 = vmatpush.msra.mxu0 0.0
        %699 = vmatpush.msra.mxu0 0.0
        %700 = vmatpush.msra.mxu0 0.0
        %701 = vmatpush.msra.mxu0 0.0
        %702 = vmatpush.msra.mxu0 0.0
        %703 = vmatpush.msra.mxu0 0.0
        %704 = vmatpush.msra.mxu0 0.0
        %705 = vmatpush.msra.mxu0 0.0
        %706 = vmatpush.msra.mxu0 0.0
        %707 = vmatpush.msra.mxu0 %v607
        %708 = vmatmul.f32.gmra.mxu0 %v690
        %v709 = vpop.f32.mrf.mxu0
        %v710 = vadd.f32 0.0, %v709
        %711 = vdwg.mxu0
        %v712 = vld [vmem:[#allocation5] sm:$0xff]
        %v713 = vld [vmem:[#allocation5 + $0x8] sm:$0xff]
        %v714 = vld [vmem:[#allocation5 + $0x10] sm:$0xff]
        %v715 = vld [vmem:[#allocation5 + $0x18] sm:$0xff]
        %v716 = vsel %vm623, %v644, -inf
        %717 = vmax.xlane.f32.xlu0 %v716
        %v718 = vpop.xlane.xlu0 %717
        %v719 = vsel %vm623, %v666, -inf
        %720 = vmax.xlane.f32.xlu0 %v719
        %v721 = vpop.xlane.xlu0 %720
        %v722 = vsel %vm623, %v688, -inf
        %723 = vmax.xlane.f32.xlu0 %v722
        %v724 = vpop.xlane.xlu0 %723
        %v725 = vsel %vm623, %v710, -inf
        %726 = vmax.xlane.f32.xlu0 %v725
        %v727 = vpop.xlane.xlu0 %726
        %v728 = vmax.f32 %v712, %v718
        %v729 = vmax.f32 %v713, %v721
        %v730 = vmax.f32 %v714, %v724
        %v731 = vmax.f32 %v715, %v727
        %v732 = vsub.f32 %v712, %v728
        %v733 = vsub.f32 %v713, %v729
        %v734 = vsub.f32 %v714, %v730
        %v735 = vsub.f32 %v715, %v731
        %v736 = vmul.f32 %v732, 1.442695
        %v737 = vpow.pop %v736
        %v738 = vmul.f32 %v733, 1.442695
        %v739 = vpow.pop %v738
        %v740 = vmul.f32 %v734, 1.442695
        %v741 = vpow.pop %v740
        %v742 = vmul.f32 %v735, 1.442695
        %v743 = vpow.pop %v742
        %745 = vset.pattern.permute.xlu0 0
        %746 = vperm.xlu0 %745, %v728
        %v747 = vpop.permute.xlu0 %746
        %750 = vset.pattern.permute.xlu0 0
        %751 = vperm.xlu0 %750, %v729
        %v752 = vpop.permute.xlu0 %751
        %755 = vset.pattern.permute.xlu0 0
        %756 = vperm.xlu0 %755, %v730
        %v757 = vpop.permute.xlu0 %756
        %760 = vset.pattern.permute.xlu0 0
        %761 = vperm.xlu0 %760, %v731
        %v762 = vpop.permute.xlu0 %761
        %v764 = vsub.f32 %v644, %v747
        %v765 = vsub.f32 %v666, %v752
        %v766 = vsub.f32 %v688, %v757
        %v767 = vsub.f32 %v710, %v762
        %v768 = vmul.f32 %v764, 1.442695
        %v769 = vpow.pop %v768
        %v770 = vmul.f32 %v765, 1.442695
        %v771 = vpow.pop %v770
        %v772 = vmul.f32 %v766, 1.442695
        %v773 = vpow.pop %v772
        %v774 = vmul.f32 %v767, 1.442695
        %v775 = vpow.pop %v774
        %v776 = vld [vmem:[#allocation6] sm:$0xff]
        %v777 = vld [vmem:[#allocation6 + $0x8] sm:$0xff]
        %v778 = vld [vmem:[#allocation6 + $0x10] sm:$0xff]
        %v779 = vld [vmem:[#allocation6 + $0x18] sm:$0xff]
        %v780 = vmul.f32 %v737, %v776
        %v781 = vmul.f32 %v739, %v777
        %v782 = vmul.f32 %v741, %v778
        %v783 = vmul.f32 %v743, %v779
        %v784 = vsel %vm623, %v769, 0.0
        %785 = vadd.xlane.f32.xlu0 %v784
        %v786 = vpop.xlane.xlu0 %785
        %v787 = vsel %vm623, %v771, 0.0
        %788 = vadd.xlane.f32.xlu0 %v787
        %v789 = vpop.xlane.xlu0 %788
        %v790 = vsel %vm623, %v773, 0.0
        %791 = vadd.xlane.f32.xlu0 %v790
        %v792 = vpop.xlane.xlu0 %791
        %v793 = vsel %vm623, %v775, 0.0
        %794 = vadd.xlane.f32.xlu0 %v793
        %v795 = vpop.xlane.xlu0 %794
        %v796 = vadd.f32 %v780, %v786
        %v797 = vadd.f32 %v781, %v789
        %v798 = vadd.f32 %v782, %v792
        %v799 = vadd.f32 %v783, %v795
        %vm800 = vcmask 7168
        %801 = vst.msk [vmem:[#allocation6] sm:$0xff] %vm800, %v796
        %802 = vst.msk [vmem:[#allocation6 + $0x8] sm:$0xff] %vm800, %v797
        %803 = vst.msk [vmem:[#allocation6 + $0x10] sm:$0xff] %vm800, %v798
        %804 = vst.msk [vmem:[#allocation6 + $0x18] sm:$0xff] %vm800, %v799
        %v805 = vld [vmem:[#allocation7] sm:$0xff]
        %v806 = vld [vmem:[#allocation7 + $0x8] sm:$0xff]
        %v807 = vld [vmem:[#allocation7 + $0x10] sm:$0xff]
        %v808 = vld [vmem:[#allocation7 + $0x18] sm:$0xff]
        %810 = vset.pattern.permute.xlu0 0
        %811 = vperm.xlu0 %810, %v737
        %v812 = vpop.permute.xlu0 %811
        %815 = vset.pattern.permute.xlu0 0
        %816 = vperm.xlu0 %815, %v739
        %v817 = vpop.permute.xlu0 %816
        %820 = vset.pattern.permute.xlu0 0
        %821 = vperm.xlu0 %820, %v741
        %v822 = vpop.permute.xlu0 %821
        %825 = vset.pattern.permute.xlu0 0
        %826 = vperm.xlu0 %825, %v743
        %v827 = vpop.permute.xlu0 %826
        %v829 = vmul.f32 %v812, %v805
        %v830 = vmul.f32 %v817, %v806
        %v831 = vmul.f32 %v822, %v807
        %v832 = vmul.f32 %v827, %v808
        %v834 = vsel %vm623, %v769, 0
        %836 = vmatpush.msra.mxu0 0.0
        %837 = vmatpush.msra.mxu0 0.0
        %838 = vmatpush.msra.mxu0 0.0
        %839 = vmatpush.msra.mxu0 0.0
        %840 = vmatpush.msra.mxu0 0.0
        %841 = vmatpush.msra.mxu0 0.0
        %842 = vmatpush.msra.mxu0 0.0
        %843 = vmatpush.msra.mxu0 0.0
        %844 = vmatpush.msra.mxu0 0.0
        %845 = vmatpush.msra.mxu0 0.0
        %846 = vmatpush.msra.mxu0 0.0
        %847 = vmatpush.msra.mxu0 0.0
        %848 = vmatpush.msra.mxu0 0.0
        %849 = vmatpush.msra.mxu0 0.0
        %850 = vmatpush.msra.mxu0 0.0
        %851 = vmatpush.msra.mxu0 %v484
        %852 = vmatmul.f32.gmra.mxu0 %v834
        %v853 = vpop.f32.mrf.mxu0
        %v854 = vadd.f32 0.0, %v853
        %855 = vdwg.mxu0
        %v857 = vsel %vm623, %v771, 0
        %859 = vmatpush.msra.mxu0 0.0
        %860 = vmatpush.msra.mxu0 0.0
        %861 = vmatpush.msra.mxu0 0.0
        %862 = vmatpush.msra.mxu0 0.0
        %863 = vmatpush.msra.mxu0 0.0
        %864 = vmatpush.msra.mxu0 0.0
        %865 = vmatpush.msra.mxu0 0.0
        %866 = vmatpush.msra.mxu0 0.0
        %867 = vmatpush.msra.mxu0 0.0
        %868 = vmatpush.msra.mxu0 0.0
        %869 = vmatpush.msra.mxu0 0.0
        %870 = vmatpush.msra.mxu0 0.0
        %871 = vmatpush.msra.mxu0 0.0
        %872 = vmatpush.msra.mxu0 0.0
        %873 = vmatpush.msra.mxu0 0.0
        %874 = vmatpush.msra.mxu0 %v487
        %875 = vmatmul.f32.gmra.mxu0 %v857
        %v876 = vpop.f32.mrf.mxu0
        %v877 = vadd.f32 0.0, %v876
        %878 = vdwg.mxu0
        %v880 = vsel %vm623, %v773, 0
        %882 = vmatpush.msra.mxu0 0.0
        %883 = vmatpush.msra.mxu0 0.0
        %884 = vmatpush.msra.mxu0 0.0
        %885 = vmatpush.msra.mxu0 0.0
        %886 = vmatpush.msra.mxu0 0.0
        %887 = vmatpush.msra.mxu0 0.0
        %888 = vmatpush.msra.mxu0 0.0
        %889 = vmatpush.msra.mxu0 0.0
        %890 = vmatpush.msra.mxu0 0.0
        %891 = vmatpush.msra.mxu0 0.0
        %892 = vmatpush.msra.mxu0 0.0
        %893 = vmatpush.msra.mxu0 0.0
        %894 = vmatpush.msra.mxu0 0.0
        %895 = vmatpush.msra.mxu0 0.0
        %896 = vmatpush.msra.mxu0 0.0
        %897 = vmatpush.msra.mxu0 %v490
        %898 = vmatmul.f32.gmra.mxu0 %v880
        %v899 = vpop.f32.mrf.mxu0
        %v900 = vadd.f32 0.0, %v899
        %901 = vdwg.mxu0
        %v903 = vsel %vm623, %v775, 0
        %905 = vmatpush.msra.mxu0 0.0
        %906 = vmatpush.msra.mxu0 0.0
        %907 = vmatpush.msra.mxu0 0.0
        %908 = vmatpush.msra.mxu0 0.0
        %909 = vmatpush.msra.mxu0 0.0
        %910 = vmatpush.msra.mxu0 0.0
        %911 = vmatpush.msra.mxu0 0.0
        %912 = vmatpush.msra.mxu0 0.0
        %913 = vmatpush.msra.mxu0 0.0
        %914 = vmatpush.msra.mxu0 0.0
        %915 = vmatpush.msra.mxu0 0.0
        %916 = vmatpush.msra.mxu0 0.0
        %917 = vmatpush.msra.mxu0 0.0
        %918 = vmatpush.msra.mxu0 0.0
        %919 = vmatpush.msra.mxu0 0.0
        %920 = vmatpush.msra.mxu0 %v493
        %921 = vmatmul.f32.gmra.mxu0 %v903
        %v922 = vpop.f32.mrf.mxu0
        %v923 = vadd.f32 0.0, %v922
        %924 = vdwg.mxu0
        %v925 = vadd.f32 %v829, %v854
        %v926 = vadd.f32 %v830, %v877
        %v927 = vadd.f32 %v831, %v900
        %v928 = vadd.f32 %v832, %v923
        %929 = vst.msk [vmem:[#allocation7] sm:$0xff] %vm623, %v925
        %930 = vst.msk [vmem:[#allocation7 + $0x8] sm:$0xff] %vm623, %v926
        %931 = vst.msk [vmem:[#allocation7 + $0x10] sm:$0xff] %vm623, %v927
        %932 = vst.msk [vmem:[#allocation7 + $0x18] sm:$0xff] %vm623, %v928
        %933 = vst.msk [vmem:[#allocation5] sm:$0xff] %vm800, %v728
        %934 = vst.msk [vmem:[#allocation5 + $0x8] sm:$0xff] %vm800, %v729
        %935 = vst.msk [vmem:[#allocation5 + $0x10] sm:$0xff] %vm800, %v730
        %936 = vst.msk [vmem:[#allocation5 + $0x18] sm:$0xff] %vm800, %v731
        // Predicated region
        $region69: #{tpu_custom_call.1} parent=43 // pred_check
          %p937 = pneg %p366
        $region70: #{tpu_custom_call.1} parent=43 // pred_check_branch
          %939 = sbr.rel (%p937) target = $region72
        $region71: #{tpu_custom_call.1} parent=43 // pred_region
          %v940 = vld [vmem:[#allocation7] sm:$0xff]
          %v941 = vld [vmem:[#allocation7 + $0x8] sm:$0xff]
          %v942 = vld [vmem:[#allocation7 + $0x10] sm:$0xff]
          %v943 = vld [vmem:[#allocation7 + $0x18] sm:$0xff]
          %v944 = vld [vmem:[#allocation6] sm:$0xff]
          %v945 = vld [vmem:[#allocation6 + $0x8] sm:$0xff]
          %v946 = vld [vmem:[#allocation6 + $0x10] sm:$0xff]
          %v947 = vld [vmem:[#allocation6 + $0x18] sm:$0xff]
          %v948 = vrcp.pop %v944
          %v949 = vmul.f32 %v944, %v948
          %v950 = vsub.f32 1.0, %v949
          %v951 = vmul.f32 %v948, %v950
          %v952 = vadd.f32 %v948, %v951
          %vm953 = vweird.f32 %v944
          %vm954 = vweird.f32 %v948
          %vm955 = vmor %vm953, %vm954
          %v956 = vsel %vm955, %v948, %v952
          %v957 = vand.u32 2147483647, %v944
          %vm958 = vcmp.eq.f32.partialorder %v957, 8.507059e+37
          %v959 = vand.u32 %v944, 2147483648
          %v960 = vor.u32 1.1754944e-38, %v959
          %v961 = vsel %vm958, %v960, %v956
          %v962 = vrcp.pop %v945
          %v963 = vmul.f32 %v945, %v962
          %v964 = vsub.f32 1.0, %v963
          %v965 = vmul.f32 %v962, %v964
          %v966 = vadd.f32 %v962, %v965
          %vm967 = vweird.f32 %v945
          %vm968 = vweird.f32 %v962
          %vm969 = vmor %vm967, %vm968
          %v970 = vsel %vm969, %v962, %v966
          %v971 = vand.u32 2147483647, %v945
          %vm972 = vcmp.eq.f32.partialorder %v971, 8.507059e+37
          %v973 = vand.u32 %v945, 2147483648
          %v974 = vor.u32 1.1754944e-38, %v973
          %v975 = vsel %vm972, %v974, %v970
          %v976 = vrcp.pop %v946
          %v977 = vmul.f32 %v946, %v976
          %v978 = vsub.f32 1.0, %v977
          %v979 = vmul.f32 %v976, %v978
          %v980 = vadd.f32 %v976, %v979
          %vm981 = vweird.f32 %v946
          %vm982 = vweird.f32 %v976
          %vm983 = vmor %vm981, %vm982
          %v984 = vsel %vm983, %v976, %v980
          %v985 = vand.u32 2147483647, %v946
          %vm986 = vcmp.eq.f32.partialorder %v985, 8.507059e+37
          %v987 = vand.u32 %v946, 2147483648
          %v988 = vor.u32 1.1754944e-38, %v987
          %v989 = vsel %vm986, %v988, %v984
          %v990 = vrcp.pop %v947
          %v991 = vmul.f32 %v947, %v990
          %v992 = vsub.f32 1.0, %v991
          %v993 = vmul.f32 %v990, %v992
          %v994 = vadd.f32 %v990, %v993
          %vm995 = vweird.f32 %v947
          %vm996 = vweird.f32 %v990
          %vm997 = vmor %vm995, %vm996
          %v998 = vsel %vm997, %v990, %v994
          %v999 = vand.u32 2147483647, %v947
          %vm1000 = vcmp.eq.f32.partialorder %v999, 8.507059e+37
          %v1001 = vand.u32 %v947, 2147483648
          %v1002 = vor.u32 1.1754944e-38, %v1001
          %v1003 = vsel %vm1000, %v1002, %v998
          %1005 = vset.pattern.permute.xlu0 0
          %1006 = vperm.xlu0 %1005, %v961
          %v1007 = vpop.permute.xlu0 %1006
          %1010 = vset.pattern.permute.xlu0 0
          %1011 = vperm.xlu0 %1010, %v975
          %v1012 = vpop.permute.xlu0 %1011
          %1015 = vset.pattern.permute.xlu0 0
          %1016 = vperm.xlu0 %1015, %v989
          %v1017 = vpop.permute.xlu0 %1016
          %1020 = vset.pattern.permute.xlu0 0
          %1021 = vperm.xlu0 %1020, %v1003
          %v1022 = vpop.permute.xlu0 %1021
          %v1024 = vmul.f32 %v940, %v1007
          %v1025 = vmul.f32 %v941, %v1012
          %v1026 = vmul.f32 %v942, %v1017
          %v1027 = vmul.f32 %v943, %v1022
          %v1028 = vrot.slane %v1026, 4
          %vm1029 = vcmask 1047556
          %v1030 = vsel %vm1029, %v1028, %v1024
          %v1031 = vrot.slane %v1024, 4
          %v1032 = vsel %vm1029, %v1026, %v1031
          %v1034 = vunpack.c.l.s4 1983009808
          %v1035 = vunpack.c.0.s8 %v1034
          %v1036 = vperm.slane %v1030, %v1035
          %v1038 = vunpack.c.l.s4 1983009808
          %v1039 = vunpack.c.0.s8 %v1038
          %v1040 = vperm.slane %v1032, %v1039
          %v1041 = vrot.slane %v1027, 4
          %v1042 = vsel %vm1029, %v1041, %v1025
          %v1043 = vrot.slane %v1025, 4
          %v1044 = vsel %vm1029, %v1027, %v1043
          %v1046 = vunpack.c.l.s4 1983009808
          %v1047 = vunpack.c.0.s8 %v1046
          %v1048 = vperm.slane %v1042, %v1047
          %v1050 = vunpack.c.l.s4 1983009808
          %v1051 = vunpack.c.0.s8 %v1050
          %v1052 = vperm.slane %v1044, %v1051
          %v1053 = vrot.slane %v1048, 4
          %v1054 = vsel %vm1029, %v1053, %v1036
          %v1055 = vrot.slane %v1036, 4
          %v1056 = vsel %vm1029, %v1048, %v1055
          %v1058 = vunpack.c.l.s4 1934713408
          %v1059 = vunpack.c.0.s8 %v1058
          %v1060 = vperm.slane %v1054, %v1059
          %v1062 = vunpack.c.l.s4 1934713408
          %v1063 = vunpack.c.0.s8 %v1062
          %v1064 = vperm.slane %v1056, %v1063
          %v1065 = vrot.slane %v1052, 4
          %v1066 = vsel %vm1029, %v1065, %v1040
          %v1067 = vrot.slane %v1040, 4
          %v1068 = vsel %vm1029, %v1052, %v1067
          %v1070 = vunpack.c.l.s4 1934713408
          %v1071 = vunpack.c.0.s8 %v1070
          %v1072 = vperm.slane %v1066, %v1071
          %v1074 = vunpack.c.l.s4 1934713408
          %v1075 = vunpack.c.0.s8 %v1074
          %v1076 = vperm.slane %v1068, %v1075
          %v1077 = vrot.slane %v1060, 4
          %v1078 = vsel %vm1029, 0.0, %v1077
          %v1079 = vrot.slane %v1064, 4
          %v1080 = vsel %vm1029, 0.0, %v1079
          %v1081 = vrot.slane %v1072, 4
          %v1082 = vsel %vm1029, 0.0, %v1081
          %v1083 = vrot.slane %v1076, 4
          %v1084 = vsel %vm1029, 0.0, %v1083
          %v1085 = vsel %vm1029, %v1079, %v1060
          %v1087 = vunpack.c.l.s4 1983009808
          %v1088 = vunpack.c.0.s8 %v1087
          %v1089 = vperm.slane %v1085, %v1088
          %v1090 = vrot.slane %v1080, 4
          %v1091 = vsel %vm1029, %v1090, %v1078
          %v1093 = vunpack.c.l.s4 1983009808
          %v1094 = vunpack.c.0.s8 %v1093
          %v1095 = vperm.slane %v1091, %v1094
          %v1096 = vsel %vm1029, %v1083, %v1072
          %v1098 = vunpack.c.l.s4 1983009808
          %v1099 = vunpack.c.0.s8 %v1098
          %v1100 = vperm.slane %v1096, %v1099
          %v1101 = vrot.slane %v1084, 4
          %v1102 = vsel %vm1029, %v1101, %v1082
          %v1104 = vunpack.c.l.s4 1983009808
          %v1105 = vunpack.c.0.s8 %v1104
          %v1106 = vperm.slane %v1102, %v1105
          %v1107 = vrot.slane %v1095, 4
          %v1108 = vsel %vm1029, %v1107, %v1089
          %v1109 = vrot.slane %v1089, 4
          %v1110 = vsel %vm1029, %v1095, %v1109
          %v1112 = vunpack.c.l.s4 1934713408
          %v1113 = vunpack.c.0.s8 %v1112
          %v1114 = vperm.slane %v1108, %v1113
          %v1116 = vunpack.c.l.s4 1934713408
          %v1117 = vunpack.c.0.s8 %v1116
          %v1118 = vperm.slane %v1110, %v1117
          %v1119 = vrot.slane %v1106, 4
          %v1120 = vsel %vm1029, %v1119, %v1100
          %v1121 = vrot.slane %v1100, 4
          %v1122 = vsel %vm1029, %v1106, %v1121
          %v1124 = vunpack.c.l.s4 1934713408
          %v1125 = vunpack.c.0.s8 %v1124
          %v1126 = vperm.slane %v1120, %v1125
          %v1128 = vunpack.c.l.s4 1934713408
          %v1129 = vunpack.c.0.s8 %v1128
          %v1130 = vperm.slane %v1122, %v1129
          %v1131 = vrot.slane %v1126, 4
          %v1132 = vsel %vm1029, %v1131, %v1114
          %v1133 = vrot.slane %v1114, 4
          %v1134 = vsel %vm1029, %v1126, %v1133
          %v1135 = vrot.slane %v1130, 4
          %v1136 = vsel %vm1029, %v1135, %v1118
          %v1137 = vrot.slane %v1118, 4
          %v1138 = vsel %vm1029, %v1130, %v1137
          %1140 = vrot.lane.b32.xlu0 %v1134, 8
          %v1141 = vpop.permute.xlu0 %1140
          %1144 = vrot.lane.b32.xlu0 %v1136, 16
          %v1145 = vpop.permute.xlu0 %1144
          %1148 = vrot.lane.b32.xlu0 %v1138, 24
          %v1149 = vpop.permute.xlu0 %1148
          %v1151 = vsel %vm623, %v1132, %v1141
          %vm1152 = vcmask 130048
          %v1153 = vsel %vm1152, %v1151, %v1145
          %vm1154 = vcmask 195584
          %v1155 = vsel %vm1154, %v1153, %v1149
          %vm1156 = vcmask 261120
          %1157 = vst.msk [vmem:[%s364] sm:$0xff] %vm1156, %v1155
        $region72: #{tpu_custom_call.1} parent=43 // pred_fallthru
          _
        %s1158 = sand.u32 %s194, 1
        %s1159 = scalar_lea.sflag [#allocation10], %s1158
        %s1160 = sand.u32 %s194, 1
        %s1161 = smul.addr %s1160, 8
        %s1162 = scalar_lea.vmem [#allocation16], %s1161
        // Predicated region
        $region73: #{tpu_custom_call.1} parent=43 // pred_check
          %p1163 = pneg %p204
        $region74: #{tpu_custom_call.1} parent=43 // pred_check_branch
          %1165 = sbr.rel (%p1163) target = $region76
        $region75: #{tpu_custom_call.1} parent=43 // pred_region
          %1167 = vsyncadd %s1159, 0
          %s1168 = sadd.s32 %s33, %s32
          %s1169 = smul.addr %s1168, 8
          %s1170 = scalar_lea.hbm %s6, %s1169
          %s1172 = sshll.u32 %s1162, 4
          %s1173 = int_to_ptr.vmem [resolvable:$true] %s1172
          %s1174 = sshll.u32 %s1170, 4
          %s1175 = int_to_ptr.hbm [resolvable:$true] %s1174
          %1177 = dma.vmem_to_hbm [thread:$0]  %s1173, 128, %s1175, %s1159
        $region76: #{tpu_custom_call.1} parent=43 // pred_fallthru
          _
      $region44: #{tpu_custom_call.1} parent=5 // pred_fallthru
        _
      %p1178 = scmp.le.s32.totalorder 2, %s22
      // Predicated region
      $region77: #{tpu_custom_call.1} parent=5 // pred_check
        %p1179 = pneg %p1178
      $region78: #{tpu_custom_call.1} parent=5 // pred_check_branch
        %1181 = sbr.rel (%p1179) target = $region80
      $region79: #{tpu_custom_call.1} parent=5 // pred_region
        %s1182 = ssub.s32 %s22, 2
        // Predicated region
        $region81: #{tpu_custom_call.1} parent=79 // pred_check
          %p1183 = pneg %p210
        $region82: #{tpu_custom_call.1} parent=79 // pred_check_branch
          %1185 = sbr.rel (%p1183) target = $region84
        $region83: #{tpu_custom_call.1} parent=79 // pred_region
          %s1186 = sand.u32 %s195, 1
          %s1187 = scalar_lea.sflag [#allocation10], %s1186
          %s1188 = sand.u32 %s195, 1
          %s1189 = smul.addr %s1188, 8
          %s1190 = scalar_lea.vmem [#allocation16], %s1189
          %1192 = dma.done %s1187, 128
        $region84: #{tpu_custom_call.1} parent=79 // pred_fallthru
          _
      $region80: #{tpu_custom_call.1} parent=5 // pred_fallthru
        _
    $region6: #{tpu_custom_call.1} parent=1 // loop_footer
      %s26 = sadd.s32 1, %s22
    $region7: #{tpu_custom_call.1} parent=1 // loop_footer_branch
      %21 = sbr.rel target = $region3
    $region8: #{tpu_custom_call.1} parent=1 // loop_exit
      _
    %1193 = vsyncpa [#allocation9], 1
    %s1194 = scalar_lea.sflag [#allocation9], 1
    %1195 = vsyncpa %s1194, 1
    %1196 = vsyncpa [#allocation12], 1
    %s1197 = scalar_lea.sflag [#allocation12], 1
    %1198 = vsyncpa %s1197, 1
    %1199 = vsyncpa [#allocation15], 1
    %1200 = vsyncpa [#allocation10], 1
    %s1201 = scalar_lea.sflag [#allocation10], 1
    %1202 = vsyncpa %s1201, 1

</llo_original>
